<compile_context>
chip_gen: v6e
topology: v6e:2x2x1
jax: 0.10.0
libtpu: 0.0.40
codegen_flags: <defaults>
</compile_context>

<pallas_src>
import jax
import jax.numpy as jnp
from jax.experimental import pallas as pl
from jax.experimental.pallas import tpu as pltpu


def _bmm_kernel(a_ref, x_ref, o_ref, acc_ref):
    # a_ref: [bblk, tm, tk], x_ref: [bblk, tk, Dp], o_ref/acc_ref: [bblk, tm, Dp]
    @pl.when(pl.program_id(2) == 0)
    def _():
        acc_ref[...] = jnp.zeros_like(acc_ref)

    acc_ref[...] += jnp.einsum(
        "bij,bjd->bid",
        a_ref[...],
        x_ref[...],
        preferred_element_type=jnp.float32,
    )

    @pl.when(pl.program_id(2) == pl.num_programs(2) - 1)
    def _():
        o_ref[...] = acc_ref[...].astype(o_ref.dtype)


def _pick_dim_tile(n):
    """Largest MXU-friendly tile that divides n; falls back to the full dim."""
    for c in (256, 128):
        if n % c == 0:
            return c
    return n


def _choose_tiles(B, N, Dp, in_bytes, out_bytes, budget):
    """Pick (bblk, tm, tk) so double-buffered tiles + accumulator fit `budget`."""
    tm = _pick_dim_tile(N)
    tk = _pick_dim_tile(N)

    def fits(bblk, tm_, tk_):
        a_tile = bblk * tm_ * tk_ * in_bytes
        x_tile = bblk * tk_ * Dp * in_bytes
        o_tile = bblk * tm_ * Dp * out_bytes
        acc = bblk * tm_ * Dp * 4
        return 2 * (a_tile + x_tile + o_tile) + acc <= budget

    # Fold as many batches as fit (cap at 8 so huge B still leaves a parallel
    # batch axis for megacore sharding).
    bblk = min(B, 8)
    while B % bblk:
        bblk -= 1
    while bblk > 1 and not fits(bblk, tm, tk):
        bblk -= 1
        while B % bblk:
            bblk -= 1
    if not fits(bblk, tm, tk) and N % 128 == 0:
        tm = tk = 128
    return bblk, tm, tk


def pallas_bmm(a, x, *, compute_dtype=None):
    """Batched matmul: out[b] = a[b] @ x[b].  a: [B,N,N], x: [B,N,D]."""
    B, N, N2 = a.shape
    assert N == N2
    B2, N3, D = x.shape
    assert B2 == B and N3 == N

    out_dtype = x.dtype

    # Lane-dense feature axis: pad D up to a multiple of 128 (unmasked stores).
    Dp = ((D + 127) // 128) * 128
    if Dp != D:
        x = jnp.pad(x, ((0, 0), (0, 0), (0, Dp - D)))

    if compute_dtype is not None:
        a = a.astype(compute_dtype)
        x = x.astype(compute_dtype)

    in_bytes = jnp.dtype(a.dtype).itemsize
    out_bytes = jnp.dtype(out_dtype).itemsize

    # Generation-aware VMEM budget (v7x: 64 MiB physical; v5e/v6e: 128 MiB).
    try:
        vmem_cap = pltpu.get_tpu_info().vmem_capacity_bytes
    except Exception:
        vmem_cap = 64 << 20  # v7x-safe fallback
    budget = (vmem_cap * 3) // 4  # leave headroom for compiler scratch

    bblk, tm, tk = _choose_tiles(B, N, Dp, in_bytes, out_bytes, budget)
    grid = (B // bblk, N // tm, N // tk)

    cost = pl.CostEstimate(
        flops=2 * B * N * N * Dp,
        transcendentals=0,
        bytes_accessed=in_bytes * (B * N * N + B * N * Dp)
        + out_bytes * B * N * Dp,
    )

    out = pl.pallas_call(
        _bmm_kernel,
        out_shape=jax.ShapeDtypeStruct((B, N, Dp), out_dtype),
        grid_spec=pltpu.PrefetchScalarGridSpec(
            num_scalar_prefetch=0,
            grid=grid,
            in_specs=[
                pl.BlockSpec((bblk, tm, tk), lambda b, i, k: (b, i, k)),
                pl.BlockSpec((bblk, tk, Dp), lambda b, i, k: (b, k, 0)),
            ],
            out_specs=pl.BlockSpec((bblk, tm, Dp), lambda b, i, k: (b, i, 0)),
            scratch_shapes=[pltpu.VMEM((bblk, tm, Dp), jnp.float32)],
        ),
        compiler_params=pltpu.CompilerParams(
            dimension_semantics=("parallel", "parallel", "arbitrary"),
            vmem_limit_bytes=int(budget),
        ),
        cost_estimate=cost,
    )(a, x)

    return out[..., :D] if Dp != D else out


class ODEGraphFunc:
    """JAX/Pallas port of the PyTorch ODEGraphFunc module.

    Note: mode / A1-A3 selection is Python-level state (same as the torch
    module); changing mode under jit retraces the pallas_call.
    """

    def __init__(self):
        self.mode = None
        self.A1 = None
        self.A2 = None
        self.A3 = None

    def __call__(self, t, x):
        if self.mode == "A1":
            return pallas_bmm(self.A1, x)
        elif self.mode == "A2":
            return pallas_bmm(self.A2, x)
        elif self.mode == "A3":
            return pallas_bmm(self.A3, x)
        return x


if __name__ == "__main__":
    # Small deterministic shapes: batch=2, graph nodes N=16, feature dim D=32.
    B, N, D = 2, 16, 32
    key = jax.random.PRNGKey(0)
    k1, k2, k3, k4 = jax.random.split(key, 4)

    func = ODEGraphFunc()
    # Deterministic synthetic "adjacency" parameters (what __init__ would hold).
    func.A1 = jax.random.normal(k1, (B, N, N), dtype=jnp.float32)
    func.A2 = jax.random.normal(k2, (B, N, N), dtype=jnp.float32)
    func.A3 = jax.random.normal(k3, (B, N, N), dtype=jnp.float32)

    x = jax.random.normal(k4, (B, N, D), dtype=jnp.float32)
    t = jnp.float32(0.0)

    ok = True
    for mode, A in (("A1", func.A1), ("A2", func.A2), ("A3", func.A3)):
        func.mode = mode
        out = func(t, x)
        jax.block_until_ready(out)
        ref = jnp.einsum("bij,bjd->bid", A, x)
        if out.shape != ref.shape or not jnp.allclose(out, ref, atol=1e-4, rtol=1e-4):
            ok = False

    # mode=None pass-through check
    func.mode = None
    out_none = func(t, x)
    jax.block_until_ready(out_none)
    if not jnp.allclose(out_none, x):
        ok = False

    if ok:
        print("KERNEL_OK")
</pallas_src>

<mosaic_0001>
module attributes {stable_mosaic.version = 11 : i64} {
  func.func @_bmm_kernel(%arg0: i32, %arg1: i32, %arg2: i32, %arg3: memref<2x16x16xf32, #tpu.memory_space<vmem>>, %arg4: memref<2x16x128xf32, #tpu.memory_space<vmem>>, %arg5: memref<2x16x128xf32, #tpu.memory_space<vmem>>, %arg6: memref<2x16x128xf32, #tpu.memory_space<vmem>>) attributes {dimension_semantics = [#tpu.dimension_semantics<parallel>, #tpu.dimension_semantics<parallel>, #tpu.dimension_semantics<arbitrary>], iteration_bounds = array<i64: 1, 1, 1>, scalar_prefetch = 0 : i64, scratch_operands = 1 : i64, tpu.core_type = #tpu.core_type<tc>, window_params = [{transform_indices = @transform_0, window_bounds = array<i64: 2, 16, 16>}, {transform_indices = @transform_1, window_bounds = array<i64: 2, 16, 128>}, {transform_indices = @transform_2, window_bounds = array<i64: 2, 16, 128>}]} {
    %c0_i32 = arith.constant 0 : i32
    %0 = arith.cmpi eq, %arg2, %c0_i32 : i32
    %1 = arith.extui %0 : i1 to i32
    %c0_i32_0 = arith.constant 0 : i32
    %2 = arith.cmpi ne, %1, %c0_i32_0 : i32
    scf.if %2 {
      %cst_14 = arith.constant 0.000000e+00 : f32
      %12 = vector.broadcast %cst_14 : f32 to vector<2x16x128xf32>
      %c0_15 = arith.constant 0 : index
      %c0_16 = arith.constant 0 : index
      %c0_17 = arith.constant 0 : index
      %13 = vector.load %arg6[%c0_15, %c0_16, %c0_17] : memref<2x16x128xf32, #tpu.memory_space<vmem>>, vector<2x16x128xf32>
      tpu.vector_store %arg6[%c0_15, %c0_16, %c0_17], %12 {strides = array<i32>} : memref<2x16x128xf32, #tpu.memory_space<vmem>>, vector<2x16x128xf32>,
    } else {
    }
    %c0 = arith.constant 0 : index
    %c0_1 = arith.constant 0 : index
    %c0_2 = arith.constant 0 : index
    %3 = vector.load %arg6[%c0, %c0_1, %c0_2] : memref<2x16x128xf32, #tpu.memory_space<vmem>>, vector<2x16x128xf32>
    %c0_3 = arith.constant 0 : index
    %c0_4 = arith.constant 0 : index
    %c0_5 = arith.constant 0 : index
    %4 = vector.load %arg3[%c0_3, %c0_4, %c0_5] : memref<2x16x16xf32, #tpu.memory_space<vmem>>, vector<2x16x16xf32>
    %c0_6 = arith.constant 0 : index
    %c0_7 = arith.constant 0 : index
    %c0_8 = arith.constant 0 : index
    %5 = vector.load %arg4[%c0_6, %c0_7, %c0_8] : memref<2x16x128xf32, #tpu.memory_space<vmem>>, vector<2x16x128xf32>
    "tpu.trace_start"() <{level = 10 : i32, message = "bij,bjd->bid"}> : () -> ()
    %cst = arith.constant dense<0.000000e+00> : vector<2x16x128xf32>
    %6 = tpu.matmul %4, %5, %cst {dimension_numbers = #tpu.dot_dimension_numbers<[2], [1], [1], [2], [0, 0, 0, 1, 1, 2], [0], [0]>} : vector<2x16x16xf32>, vector<2x16x128xf32>, vector<2x16x128xf32> -> vector<2x16x128xf32>
    "tpu.trace_stop"() : () -> ()
    %7 = arith.addf %3, %6 : vector<2x16x128xf32>
    %c0_9 = arith.constant 0 : index
    %c0_10 = arith.constant 0 : index
    %c0_11 = arith.constant 0 : index
    %8 = vector.load %arg6[%c0_9, %c0_10, %c0_11] : memref<2x16x128xf32, #tpu.memory_space<vmem>>, vector<2x16x128xf32>
    tpu.vector_store %arg6[%c0_9, %c0_10, %c0_11], %7 {strides = array<i32>} : memref<2x16x128xf32, #tpu.memory_space<vmem>>, vector<2x16x128xf32>,
    %c0_i32_12 = arith.constant 0 : i32
    %9 = arith.cmpi eq, %arg2, %c0_i32_12 : i32
    %10 = arith.extui %9 : i1 to i32
    %c0_i32_13 = arith.constant 0 : i32
    %11 = arith.cmpi ne, %10, %c0_i32_13 : i32
    scf.if %11 {
      %c0_14 = arith.constant 0 : index
      %c0_15 = arith.constant 0 : index
      %c0_16 = arith.constant 0 : index
      %12 = vector.load %arg6[%c0_14, %c0_15, %c0_16] : memref<2x16x128xf32, #tpu.memory_space<vmem>>, vector<2x16x128xf32>
      %c0_17 = arith.constant 0 : index
      %c0_18 = arith.constant 0 : index
      %c0_19 = arith.constant 0 : index
      %13 = vector.load %arg5[%c0_17, %c0_18, %c0_19] : memref<2x16x128xf32, #tpu.memory_space<vmem>>, vector<2x16x128xf32>
      tpu.vector_store %arg5[%c0_17, %c0_18, %c0_19], %12 {strides = array<i32>} : memref<2x16x128xf32, #tpu.memory_space<vmem>>, vector<2x16x128xf32>,
    } else {
    }
    return
  }
  func.func @transform_0(%arg0: i32, %arg1: i32, %arg2: i32) -> (i32, i32, i32) {
    %c0_i32 = arith.constant 0 : i32
    return %arg0, %arg1, %arg2 : i32, i32, i32
  }
  func.func @transform_1(%arg0: i32, %arg1: i32, %arg2: i32) -> (i32, i32, i32) {
    %c0_i32 = arith.constant 0 : i32
    %c0_i32_0 = arith.constant 0 : i32
    return %arg0, %arg2, %c0_i32 : i32, i32, i32
  }
  func.func @transform_2(%arg0: i32, %arg1: i32, %arg2: i32) -> (i32, i32, i32) {
    %c0_i32 = arith.constant 0 : i32
    %c0_i32_0 = arith.constant 0 : i32
    return %arg0, %arg1, %c0_i32 : i32, i32, i32
  }
}

</mosaic_0001>

<llo_original>
// kernel: tpu_custom_call.1
$region0: #{tpu_custom_call.1}
  #allocation0 [shape = 'u32[]', space=smem, size = 0x4, offset = 0x4, fixed_abs, tag = 'smem constant byte address 0x4 - core index']
  #allocation1 [shape = 'u32[144,128]{1,0:T(1,128)}', space=vmem, size = 0x12000, scoped, tag = 'internal scratch']
  #allocation2 [shape = 'f32[2,16,128]{2,1,0:T(8,128)}', space=vmem, size = 0x4000, scoped, tag = 'scratch operand']
  %s0 = inlined_call_operand.hbm [shape: f32[2,16,16], index: 0, kind: input, shape index: {}]
  %s1 = inlined_call_operand.hbm [shape: f32[2,16,128], index: 1, kind: input, shape index: {}]
  %s2 = inlined_call_operand.hbm [shape: f32[2,16,128], index: 2, kind: output, shape index: {}]
  %s3 = sld [smem:[#allocation0]]
  $region34: #{tpu_custom_call.1} parent=0
    _
  %s5 = ssub.s32 1, %s3
  %s6 = scalar_select 0, %s5, %s3
  $region1: #{tpu_custom_call.1} parent=0
    #allocation3 [shape = 'u8[16384]{0}', space=vmem, size = 0x4000, scoped, tag = 'input window, operand 0, single buffered']
    #allocation4 [shape = 's32[1]{0}', space=sflag, size = 0x4, scoped, tag = 'scoped memory for tpu_custom_call.1']
    #allocation5 [shape = 's32[1]{0}', space=sflag, size = 0x4, scoped, tag = 'scoped memory for tpu_custom_call.1']
    #allocation6 [shape = 'u8[16384]{0}', space=vmem, size = 0x4000, scoped, tag = 'input window, operand 1, single buffered']
    #allocation7 [shape = 's32[1]{0}', space=sflag, size = 0x4, scoped, tag = 'scoped memory for tpu_custom_call.1']
    #allocation8 [shape = 'u8[16384]{0}', space=vmem, size = 0x4000, scoped, tag = 'output window, operand 0, single buffered']
    %7 = vsyncpa [#allocation4], 0
    %8 = vsyncpa [#allocation7], 0
    %9 = vsyncpa [#allocation5], 0
    // Predicated region
    $region2: #{tpu_custom_call.1} parent=1 // pred_check
      _
    $region3: #{tpu_custom_call.1} parent=1 // pred_check_branch
      %11 = sbr.rel (0) target = $region5
    $region4: #{tpu_custom_call.1} parent=1 // pred_region
      %s13 = ssub.s32 512, 512
      %14 = vsyncadd [#allocation4], %s13
      %s15 = sshll.u32 [#allocation3], 4
      %s16 = int_to_ptr.vmem [resolvable:$true] %s15
      %21 = dma.hbm_to_vmem [thread:$0]  %s0, 512, %s16, [#allocation4], 128, 128, 8
    $region5: #{tpu_custom_call.1} parent=1 // pred_fallthru
      _
    // Predicated region
    $region6: #{tpu_custom_call.1} parent=1 // pred_check
      _
    $region7: #{tpu_custom_call.1} parent=1 // pred_check_branch
      %23 = sbr.rel (0) target = $region9
    $region8: #{tpu_custom_call.1} parent=1 // pred_region
      %s25 = ssub.s32 512, 512
      %26 = vsyncadd [#allocation7], %s25
      %s27 = sshll.u32 [#allocation6], 4
      %s28 = int_to_ptr.vmem [resolvable:$true] %s27
      %33 = dma.hbm_to_vmem [thread:$0]  %s1, 512, %s28, [#allocation7], 128, 128, 8
    $region9: #{tpu_custom_call.1} parent=1 // pred_fallthru
      _
    // Predicated region
    $region10: #{tpu_custom_call.1} parent=1 // pred_check
      _
    $region11: #{tpu_custom_call.1} parent=1 // pred_check_branch
      %35 = sbr.rel (0) target = $region13
    $region12: #{tpu_custom_call.1} parent=1 // pred_region
      %36 = dma.done [#allocation4], 512
    $region13: #{tpu_custom_call.1} parent=1 // pred_fallthru
      _
    // Predicated region
    $region14: #{tpu_custom_call.1} parent=1 // pred_check
      _
    $region15: #{tpu_custom_call.1} parent=1 // pred_check_branch
      %38 = sbr.rel (0) target = $region17
    $region16: #{tpu_custom_call.1} parent=1 // pred_region
      %39 = dma.done [#allocation7], 512
    $region17: #{tpu_custom_call.1} parent=1 // pred_fallthru
      _
    %p40 = scmp.eq.s32.totalorder 0, 0
    // Predicated region
    $region18: #{tpu_custom_call.1} parent=1 // pred_check
      %p41 = pneg %p40
    $region19: #{tpu_custom_call.1} parent=1 // pred_check_branch
      %43 = sbr.rel (%p41) target = $region21
    $region20: #{tpu_custom_call.1} parent=1 // pred_region
      %44 = vst [vmem:[#allocation2] sm:$0xff] 0.0
      %45 = vst [vmem:[#allocation2 + $0x8] sm:$0xff] 0.0
      %46 = vst [vmem:[#allocation2 + $0x10] sm:$0xff] 0.0
      %47 = vst [vmem:[#allocation2 + $0x18] sm:$0xff] 0.0
    $region21: #{tpu_custom_call.1} parent=1 // pred_fallthru
      _
    %v48 = vld [vmem:[#allocation2] sm:$0xff]
    %v49 = vld [vmem:[#allocation2 + $0x8] sm:$0xff]
    %v50 = vld [vmem:[#allocation2 + $0x10] sm:$0xff]
    %v51 = vld [vmem:[#allocation2 + $0x18] sm:$0xff]
    %v52 = vld [vmem:[#allocation3] sm:$0xff]
    %v53 = vld [vmem:[#allocation3 + $0x8] sm:$0xff]
    %v54 = vld [vmem:[#allocation3 + $0x10] sm:$0xff]
    %v55 = vld [vmem:[#allocation3 + $0x18] sm:$0xff]
    %v56 = vld [vmem:[#allocation6] sm:$0xff]
    %v57 = vld [vmem:[#allocation6 + $0x8] sm:$0xff]
    %v58 = vld [vmem:[#allocation6 + $0x10] sm:$0xff]
    %v59 = vld [vmem:[#allocation6 + $0x18] sm:$0xff]
    %vm60 = vcmask 130048
    %v62 = vsel %vm60, %v52, 0
    %v65 = vsel %vm60, %v53, 0
    %67 = vmatprep.subr.mxu0 0.0
    %68 = vmatpush1.msra.mxu0 0.0
    %69 = vmatprep.subr.mxu0 0.0
    %70 = vmatpush1.msra.mxu0 0.0
    %71 = vmatprep.subr.mxu0 0.0
    %72 = vmatpush1.msra.mxu0 0.0
    %73 = vmatprep.subr.mxu0 0.0
    %74 = vmatpush1.msra.mxu0 0.0
    %75 = vmatprep.subr.mxu0 0.0
    %76 = vmatpush1.msra.mxu0 0.0
    %77 = vmatprep.subr.mxu0 0.0
    %78 = vmatpush1.msra.mxu0 0.0
    %79 = vmatprep.subr.mxu0 0.0
    %80 = vmatpush1.msra.mxu0 0.0
    %81 = vmatprep.subr.mxu0 0.0
    %82 = vmatpush1.msra.mxu0 0.0
    %83 = vmatprep.subr.mxu0 0.0
    %84 = vmatpush1.msra.mxu0 0.0
    %85 = vmatprep.subr.mxu0 0.0
    %86 = vmatpush1.msra.mxu0 0.0
    %87 = vmatprep.subr.mxu0 0.0
    %88 = vmatpush1.msra.mxu0 0.0
    %89 = vmatprep.subr.mxu0 0.0
    %90 = vmatpush1.msra.mxu0 0.0
    %91 = vmatprep.subr.mxu0 0.0
    %92 = vmatpush1.msra.mxu0 0.0
    %93 = vmatprep.subr.mxu0 0.0
    %94 = vmatpush1.msra.mxu0 0.0
    %95 = vmatprep.subr.mxu0 0.0
    %96 = vmatpush1.msra.mxu0 %v57
    %97 = vmatprep.subr.mxu0 0.0
    %98 = vmatpush1.msra.mxu0 %v56
    %99 = vmatprep.subr.mxu0 0.0
    %100 = vmatpush2.msra.mxu0 0.0
    %101 = vmatprep.subr.mxu0 0.0
    %102 = vmatpush2.msra.mxu0 0.0
    %103 = vmatprep.subr.mxu0 0.0
    %104 = vmatpush2.msra.mxu0 0.0
    %105 = vmatprep.subr.mxu0 0.0
    %106 = vmatpush2.msra.mxu0 0.0
    %107 = vmatprep.subr.mxu0 0.0
    %108 = vmatpush2.msra.mxu0 0.0
    %109 = vmatprep.subr.mxu0 0.0
    %110 = vmatpush2.msra.mxu0 0.0
    %111 = vmatprep.subr.mxu0 0.0
    %112 = vmatpush2.msra.mxu0 0.0
    %113 = vmatprep.subr.mxu0 0.0
    %114 = vmatpush2.msra.mxu0 0.0
    %115 = vmatprep.subr.mxu0 0.0
    %116 = vmatpush2.msra.mxu0 0.0
    %117 = vmatprep.subr.mxu0 0.0
    %118 = vmatpush2.msra.mxu0 0.0
    %119 = vmatprep.subr.mxu0 0.0
    %120 = vmatpush2.msra.mxu0 0.0
    %121 = vmatprep.subr.mxu0 0.0
    %122 = vmatpush2.msra.mxu0 0.0
    %123 = vmatprep.subr.mxu0 0.0
    %124 = vmatpush2.msra.mxu0 0.0
    %125 = vmatprep.subr.mxu0 0.0
    %126 = vmatpush2.msra.mxu0 0.0
    %127 = vmatprep.subr.mxu0 0.0
    %128 = vmatpush2.msra.mxu0 0.0
    %129 = vmatprep.subr.mxu0 0.0
    %130 = vmatpush2.msra.mxu0 0.0
    %131 = vmatprep.mubr.f32.mxu0 0.0
    %132 = vmatmul.mubr.f32.gmra.mxu0 %v62
    %v133 = vpop.f32.mrf.mxu0
    %v134 = vadd.f32 0.0, %v133
    %v135 = vpop.f32.mrf.mxu0
    %136 = vmatprep.mubr.f32.mxu0 0.0
    %137 = vmatmul.mubr.f32.gmra.mxu0 %v65
    %v138 = vpop.f32.mrf.mxu0
    %v139 = vadd.f32 0.0, %v138
    %v140 = vpop.f32.mrf.mxu0
    %141 = vdwg.mxu0
    %v143 = vsel %vm60, %v54, 0
    %v146 = vsel %vm60, %v55, 0
    %148 = vmatprep.subr.mxu0 0.0
    %149 = vmatpush1.msra.mxu0 0.0
    %150 = vmatprep.subr.mxu0 0.0
    %151 = vmatpush1.msra.mxu0 0.0
    %152 = vmatprep.subr.mxu0 0.0
    %153 = vmatpush1.msra.mxu0 0.0
    %154 = vmatprep.subr.mxu0 0.0
    %155 = vmatpush1.msra.mxu0 0.0
    %156 = vmatprep.subr.mxu0 0.0
    %157 = vmatpush1.msra.mxu0 0.0
    %158 = vmatprep.subr.mxu0 0.0
    %159 = vmatpush1.msra.mxu0 0.0
    %160 = vmatprep.subr.mxu0 0.0
    %161 = vmatpush1.msra.mxu0 0.0
    %162 = vmatprep.subr.mxu0 0.0
    %163 = vmatpush1.msra.mxu0 0.0
    %164 = vmatprep.subr.mxu0 0.0
    %165 = vmatpush1.msra.mxu0 0.0
    %166 = vmatprep.subr.mxu0 0.0
    %167 = vmatpush1.msra.mxu0 0.0
    %168 = vmatprep.subr.mxu0 0.0
    %169 = vmatpush1.msra.mxu0 0.0
    %170 = vmatprep.subr.mxu0 0.0
    %171 = vmatpush1.msra.mxu0 0.0
    %172 = vmatprep.subr.mxu0 0.0
    %173 = vmatpush1.msra.mxu0 0.0
    %174 = vmatprep.subr.mxu0 0.0
    %175 = vmatpush1.msra.mxu0 0.0
    %176 = vmatprep.subr.mxu0 0.0
    %177 = vmatpush1.msra.mxu0 %v59
    %178 = vmatprep.subr.mxu0 0.0
    %179 = vmatpush1.msra.mxu0 %v58
    %180 = vmatprep.subr.mxu0 0.0
    %181 = vmatpush2.msra.mxu0 0.0
    %182 = vmatprep.subr.mxu0 0.0
    %183 = vmatpush2.msra.mxu0 0.0
    %184 = vmatprep.subr.mxu0 0.0
    %185 = vmatpush2.msra.mxu0 0.0
    %186 = vmatprep.subr.mxu0 0.0
    %187 = vmatpush2.msra.mxu0 0.0
    %188 = vmatprep.subr.mxu0 0.0
    %189 = vmatpush2.msra.mxu0 0.0
    %190 = vmatprep.subr.mxu0 0.0
    %191 = vmatpush2.msra.mxu0 0.0
    %192 = vmatprep.subr.mxu0 0.0
    %193 = vmatpush2.msra.mxu0 0.0
    %194 = vmatprep.subr.mxu0 0.0
    %195 = vmatpush2.msra.mxu0 0.0
    %196 = vmatprep.subr.mxu0 0.0
    %197 = vmatpush2.msra.mxu0 0.0
    %198 = vmatprep.subr.mxu0 0.0
    %199 = vmatpush2.msra.mxu0 0.0
    %200 = vmatprep.subr.mxu0 0.0
    %201 = vmatpush2.msra.mxu0 0.0
    %202 = vmatprep.subr.mxu0 0.0
    %203 = vmatpush2.msra.mxu0 0.0
    %204 = vmatprep.subr.mxu0 0.0
    %205 = vmatpush2.msra.mxu0 0.0
    %206 = vmatprep.subr.mxu0 0.0
    %207 = vmatpush2.msra.mxu0 0.0
    %208 = vmatprep.subr.mxu0 0.0
    %209 = vmatpush2.msra.mxu0 0.0
    %210 = vmatprep.subr.mxu0 0.0
    %211 = vmatpush2.msra.mxu0 0.0
    %212 = vmatprep.mubr.f32.mxu0 0.0
    %213 = vmatmul.mubr.f32.gmra.mxu0 %v143
    %v214 = vpop.f32.mrf.mxu0
    %v215 = vadd.f32 0.0, %v214
    %v216 = vpop.f32.mrf.mxu0
    %217 = vmatprep.mubr.f32.mxu0 0.0
    %218 = vmatmul.mubr.f32.gmra.mxu0 %v146
    %v219 = vpop.f32.mrf.mxu0
    %v220 = vadd.f32 0.0, %v219
    %v221 = vpop.f32.mrf.mxu0
    %222 = vdwg.mxu0
    %v223 = vadd.f32 %v48, %v134
    %v224 = vadd.f32 %v49, %v139
    %v225 = vadd.f32 %v50, %v215
    %v226 = vadd.f32 %v51, %v220
    %227 = vst [vmem:[#allocation2] sm:$0xff] %v223
    %228 = vst [vmem:[#allocation2 + $0x8] sm:$0xff] %v224
    %229 = vst [vmem:[#allocation2 + $0x10] sm:$0xff] %v225
    %230 = vst [vmem:[#allocation2 + $0x18] sm:$0xff] %v226
    // Predicated region
    $region22: #{tpu_custom_call.1} parent=1 // pred_check
      %p231 = pneg %p40
    $region23: #{tpu_custom_call.1} parent=1 // pred_check_branch
      %233 = sbr.rel (%p231) target = $region25
    $region24: #{tpu_custom_call.1} parent=1 // pred_region
      %v234 = vld [vmem:[#allocation2] sm:$0xff]
      %v235 = vld [vmem:[#allocation2 + $0x8] sm:$0xff]
      %v236 = vld [vmem:[#allocation2 + $0x10] sm:$0xff]
      %v237 = vld [vmem:[#allocation2 + $0x18] sm:$0xff]
      %238 = vst [vmem:[#allocation8] sm:$0xff] %v234
      %239 = vst [vmem:[#allocation8 + $0x8] sm:$0xff] %v235
      %240 = vst [vmem:[#allocation8 + $0x10] sm:$0xff] %v236
      %241 = vst [vmem:[#allocation8 + $0x18] sm:$0xff] %v237
    $region25: #{tpu_custom_call.1} parent=1 // pred_fallthru
      _
    // Predicated region
    $region26: #{tpu_custom_call.1} parent=1 // pred_check
      _
    $region27: #{tpu_custom_call.1} parent=1 // pred_check_branch
      %243 = sbr.rel (0) target = $region29
    $region28: #{tpu_custom_call.1} parent=1 // pred_region
      %s245 = ssub.s32 512, 512
      %246 = vsyncadd [#allocation5], %s245
      %s247 = sshll.u32 [#allocation8], 4
      %s248 = int_to_ptr.vmem [resolvable:$true] %s247
      %253 = dma.vmem_to_hbm [thread:$0]  %s248, 512, %s2, [#allocation5], 128, 128, 8
    $region29: #{tpu_custom_call.1} parent=1 // pred_fallthru
      _
    // Predicated region
    $region30: #{tpu_custom_call.1} parent=1 // pred_check
      _
    $region31: #{tpu_custom_call.1} parent=1 // pred_check_branch
      %255 = sbr.rel (0) target = $region33
    $region32: #{tpu_custom_call.1} parent=1 // pred_region
      %256 = dma.done [#allocation5], 512
    $region33: #{tpu_custom_call.1} parent=1 // pred_fallthru
      _
    %257 = vsyncpa [#allocation4], 1
    %258 = vsyncpa [#allocation7], 1
    %259 = vsyncpa [#allocation5], 1

</llo_original>
